<compile_context>
chip_gen: v7x
topology: tpu7x:2x2x1
jax: 0.10.0
libtpu: 0.0.40
codegen_flags: <defaults>
</compile_context>

<pallas_src>
import functools

import jax
import jax.numpy as jnp
import numpy as np
from jax.experimental import pallas as pl
from jax.experimental.pallas import tpu as pltpu


def _embed_gather_kernel(tok_ref, pe_ref, table_hbm, out_ref, gather_buf, sem,
                         *, seq_len, tile_s):
    # tok_ref:    (B*S,) int32 in SMEM (scalar prefetch)
    # pe_ref:     (tile_s, D) f32 in VMEM (positional-encoding tile for these positions)
    # table_hbm:  (V, D) f32 raw HBM ref (memory_space=pl.ANY, no auto-DMA)
    # out_ref:    (1, tile_s, D) f32 output tile in VMEM
    # gather_buf: (tile_s, D) f32 VMEM scratch (gathered embedding rows)
    # sem:        scalar DMA semaphore
    b = pl.program_id(0)
    si = pl.program_id(1)
    base = b * seq_len + si * tile_s

    # Issue one row DMA per token in this tile: HBM table row -> VMEM gather-buffer row.
    @pl.loop(0, tile_s)
    def _issue(j):
        row = tok_ref[base + j]
        pltpu.make_async_copy(table_hbm.at[row], gather_buf.at[j], sem).start()

    # Wait for all tile_s row copies (all the same size, all on the same semaphore).
    @pl.loop(0, tile_s)
    def _wait(j):
        pltpu.make_async_copy(table_hbm.at[0], gather_buf.at[0], sem).wait()

    # Fused add of the positional encoding, lane-dense store.
    out_ref[0] = (gather_buf[...] + pe_ref[...]).astype(out_ref.dtype)


def _pick_tile_s(seq_len, target=512):
    """Largest divisor of seq_len that is <= target and a multiple of 8 (or seq_len itself)."""
    for t in range(min(seq_len, target), 0, -1):
        if seq_len % t == 0 and (t % 8 == 0 or t == seq_len):
            return t
    return seq_len


def transformer_embedding(tokens, table, pe, *, tile_s=None):
    """tokens: (B, S) int32, table: (V, D) f32, pe: (max_len, D) f32 -> (B, S, D) f32."""
    B, S = tokens.shape
    V, D = table.shape
    pe = pe[:S]  # handle max_len > S: only the first S positions are added

    if tile_s is None:
        tile_s = _pick_tile_s(S)
    assert S % tile_s == 0, "S must be divisible by tile_s"
    # NOTE: D that is a multiple of 128 gives fully lane-dense (unmasked) stores.

    tok_flat = tokens.reshape(B * S).astype(jnp.int32)  # 1-D -> compact SMEM layout

    kernel = functools.partial(_embed_gather_kernel, seq_len=S, tile_s=tile_s)

    out = pl.pallas_call(
        kernel,
        out_shape=jax.ShapeDtypeStruct((B, S, D), table.dtype),
        grid_spec=pltpu.PrefetchScalarGridSpec(
            num_scalar_prefetch=1,                      # token ids -> SMEM
            grid=(B, S // tile_s),
            in_specs=[
                # positional encoding: indexed by the seq-tile only, never tiled per batch
                pl.BlockSpec((tile_s, D), lambda b, s, tok: (s, 0)),
                # embedding table stays in HBM; rows are gathered with manual DMA
                pl.BlockSpec(memory_space=pl.ANY),
            ],
            out_specs=pl.BlockSpec((1, tile_s, D), lambda b, s, tok: (b, s, 0)),
            scratch_shapes=[
                pltpu.VMEM((tile_s, D), table.dtype),   # gathered embedding rows
                pltpu.SemaphoreType.DMA(()),            # row-gather DMA semaphore
            ],
        ),
        compiler_params=pltpu.CompilerParams(
            dimension_semantics=("parallel", "parallel"),  # shards across v7x's 2 TCs
            vmem_limit_bytes=32 * 1024 * 1024,
        ),
    )(tok_flat, pe, table)

    return out


def sinusoidal_pe(max_len, d_model):
    """Standard transformer sinusoidal positional encoding (max_len, d_model)."""
    pos = jnp.arange(max_len, dtype=jnp.float32)[:, None]                # (L, 1)
    i = jnp.arange(0, d_model, 2, dtype=jnp.float32)[None, :]            # (1, D/2)
    angle = pos / jnp.power(10000.0, i / d_model)                        # (L, D/2)
    pe = jnp.zeros((max_len, d_model), jnp.float32)
    pe = pe.at[:, 0::2].set(jnp.sin(angle))
    pe = pe.at[:, 1::2].set(jnp.cos(angle))
    return pe


if __name__ == "__main__":
    # Small, deterministic shapes: batch=2, seq=8, d_model=128 (lane-dense), vocab=16
    B, S, D, V = 2, 8, 128, 16

    key = jax.random.PRNGKey(0)
    k_tok, k_emb = jax.random.split(key)

    tokens = jax.random.randint(k_tok, (B, S), 0, V, dtype=jnp.int32)
    # nn.Embedding default init: N(0, 1)
    table = jax.random.normal(k_emb, (V, D), dtype=jnp.float32)
    pe = sinusoidal_pe(S, D)

    out = transformer_embedding(tokens, table, pe)
    out = jax.block_until_ready(out)

    # Pure-JAX reference: embedding lookup + positional encoding add (no dropout in forward).
    ref = table[tokens] + pe[None, :S, :]
    np.testing.assert_allclose(np.asarray(out), np.asarray(ref), rtol=1e-5, atol=1e-5)
    assert out.shape == (B, S, D) and out.dtype == jnp.float32

    print("KERNEL_OK")
</pallas_src>

<mosaic_0001>
module attributes {stable_mosaic.version = 11 : i64} {
  func.func @_embed_gather_kernel(%arg0: i32, %arg1: i32, %arg2: memref<16xi32, #tpu.memory_space<smem>>, %arg3: memref<8x128xf32, #tpu.memory_space<vmem>>, %arg4: memref<16x128xf32, #tpu.memory_space<any>>, %arg5: memref<1x8x128xf32, #tpu.memory_space<vmem>>, %arg6: memref<8x128xf32, #tpu.memory_space<vmem>>, %arg7: memref<!tpu.dma_semaphore, #tpu.memory_space<semaphore_mem>>) attributes {dimension_semantics = [#tpu.dimension_semantics<parallel>, #tpu.dimension_semantics<parallel>], iteration_bounds = array<i64: 2, 1>, scalar_prefetch = 1 : i64, scratch_operands = 2 : i64, tpu.core_type = #tpu.core_type<tc>, window_params = [{transform_indices = @transform_0, window_bounds = array<i64: 8, 128>}, {}, {transform_indices = @transform_2, window_bounds = array<i64: 1, 8, 128>}]} {
    %c8_i32 = arith.constant 8 : i32
    %0 = arith.muli %arg0, %c8_i32 : i32
    %c8_i32_0 = arith.constant 8 : i32
    %1 = arith.muli %arg1, %c8_i32_0 : i32
    %2 = arith.addi %0, %1 : i32
    %c0_i32 = arith.constant 0 : i32
    %c8_i32_1 = arith.constant 8 : i32
    %3 = arith.addi %c0_i32, %c8_i32_1 : i32
    %c1_i32 = arith.constant 1 : i32
    scf.for %arg8 = %c0_i32 to %3 step %c1_i32  : i32 {
      %c1_i32_12 = arith.constant 1 : i32
      %11 = arith.muli %arg8, %c1_i32_12 : i32
      %c0_i32_13 = arith.constant 0 : i32
      %12 = arith.addi %c0_i32_13, %11 : i32
      %13 = arith.addi %2, %12 : i32
      %14 = arith.index_cast %13 : i32 to index
      %15 = memref.load %arg2[%14] : memref<16xi32, #tpu.memory_space<smem>>
      %c0_i32_14 = arith.constant 0 : i32
      %16 = tpu.memref_slice %arg4[%15, %c0_i32_14] : memref<16x128xf32, #tpu.memory_space<any>> -> memref<1x128xf32, #tpu.memory_space<any>>
      %17 = tpu.memref_squeeze %16 : memref<1x128xf32, #tpu.memory_space<any>> -> memref<128xf32, #tpu.memory_space<any>>
      %c0_i32_15 = arith.constant 0 : i32
      %18 = tpu.memref_slice %arg6[%12, %c0_i32_15] : memref<8x128xf32, #tpu.memory_space<vmem>> -> memref<1x128xf32, #tpu.memory_space<vmem>>
      %19 = tpu.memref_squeeze %18 : memref<1x128xf32, #tpu.memory_space<vmem>> -> memref<128xf32, #tpu.memory_space<vmem>>
      tpu.enqueue_dma source(%17 : memref<128xf32, #tpu.memory_space<any>>) target(%19 : memref<128xf32, #tpu.memory_space<vmem>>) target_semaphore(%arg7 : memref<!tpu.dma_semaphore, #tpu.memory_space<semaphore_mem>>)
    }
    %c8_i32_2 = arith.constant 8 : i32
    %c0_i32_3 = arith.constant 0 : i32
    %c8_i32_4 = arith.constant 8 : i32
    %4 = arith.addi %c0_i32_3, %c8_i32_4 : i32
    %c1_i32_5 = arith.constant 1 : i32
    scf.for %arg8 = %c0_i32_3 to %4 step %c1_i32_5  : i32 {
      %c0_i32_12 = arith.constant 0 : i32
      %c0_i32_13 = arith.constant 0 : i32
      %c0_i32_14 = arith.constant 0 : i32
      %11 = tpu.memref_slice %arg4[%c0_i32_12, %c0_i32_14] : memref<16x128xf32, #tpu.memory_space<any>> -> memref<1x128xf32, #tpu.memory_space<any>>
      %12 = tpu.memref_squeeze %11 : memref<1x128xf32, #tpu.memory_space<any>> -> memref<128xf32, #tpu.memory_space<any>>
      %c0_i32_15 = arith.constant 0 : i32
      %13 = tpu.memref_slice %arg6[%c0_i32_13, %c0_i32_15] : memref<8x128xf32, #tpu.memory_space<vmem>> -> memref<1x128xf32, #tpu.memory_space<vmem>>
      %14 = tpu.memref_squeeze %13 : memref<1x128xf32, #tpu.memory_space<vmem>> -> memref<128xf32, #tpu.memory_space<vmem>>
      tpu.wait_dma2 semaphore(%arg7 : memref<!tpu.dma_semaphore, #tpu.memory_space<semaphore_mem>>) src(%12 : memref<128xf32, #tpu.memory_space<any>>) dst(%14 : memref<128xf32, #tpu.memory_space<vmem>>)
    }
    %c0 = arith.constant 0 : index
    %c0_6 = arith.constant 0 : index
    %5 = vector.load %arg6[%c0, %c0_6] : memref<8x128xf32, #tpu.memory_space<vmem>>, vector<8x128xf32>
    %c0_7 = arith.constant 0 : index
    %c0_8 = arith.constant 0 : index
    %6 = vector.load %arg3[%c0_7, %c0_8] : memref<8x128xf32, #tpu.memory_space<vmem>>, vector<8x128xf32>
    %7 = arith.addf %5, %6 : vector<8x128xf32>
    %c0_9 = arith.constant 0 : index
    %c0_10 = arith.constant 0 : index
    %c0_11 = arith.constant 0 : index
    %8 = vector.load %arg5[%c0_9, %c0_10, %c0_11] : memref<1x8x128xf32, #tpu.memory_space<vmem>>, vector<1x8x128xf32>
    %9 = vector.shape_cast %8 : vector<1x8x128xf32> to vector<8x128xf32>
    %10 = vector.shape_cast %7 : vector<8x128xf32> to vector<1x8x128xf32>
    tpu.vector_store %arg5[%c0_9, %c0_10, %c0_11], %10 {strides = array<i32>} : memref<1x8x128xf32, #tpu.memory_space<vmem>>, vector<1x8x128xf32>,
    return
  }
  func.func @transform_0(%arg0: i32, %arg1: i32, %arg2: memref<16xi32, #tpu.memory_space<smem>>) -> (i32, i32) {
    %c0_i32 = arith.constant 0 : i32
    %c0_i32_0 = arith.constant 0 : i32
    return %arg1, %c0_i32 : i32, i32
  }
  func.func @transform_2(%arg0: i32, %arg1: i32, %arg2: memref<16xi32, #tpu.memory_space<smem>>) -> (i32, i32, i32) {
    %c0_i32 = arith.constant 0 : i32
    %c0_i32_0 = arith.constant 0 : i32
    return %arg0, %arg1, %c0_i32 : i32, i32, i32
  }
}

</mosaic_0001>

<llo_original>
// kernel: tpu_custom_call.1
$region0: #{tpu_custom_call.1}
  #allocation0 [shape = 'u32[]', space=smem, size = 0x4, offset = 0x4, fixed_abs, tag = 'smem constant byte address 0x4 - core index']
  #allocation1 [shape = 'u32[144,128]{1,0:T(1,128)}', space=vmem, size = 0x12000, scoped, tag = 'internal scratch']
  #allocation2 [shape = 'f32[8,128]{1,0:T(8,128)}', space=vmem, size = 0x1000, scoped, tag = 'scratch operand']
  #allocation3 [shape = 's32[1]{0}', space=sflag, size = 0x4, scoped, tag = 'scratch operand']
  #allocation4 [shape = 's32[1]{0}', space=sflag, size = 0x4, scoped, tag = 'scoped memory for tpu_custom_call.1']
  #allocation5 [shape = 'u8[512]{0}', space=smem, size = 0x200, scoped, tag = 'prefetched SMEM operand 0']
  #allocation10 [shape = 's32[]', space=sflag, size = 0x4, offset = 0, fixed_abs, tag = 'sflag constant byte address 0x0 - dummy sync flag']
  #allocation11 [shape = 's32[]', space=sflag, size = 0x4, offset = 0, fixed_abs, tag = 'sflag constant byte address 0x0 - dummy sync flag']
  #allocation12 [shape = 'u32[]', space=smem, size = 0x4, offset = 0x44, fixed_abs, tag = 'smem constant byte address 0x44 - assertion arg 0']
  #allocation13 [shape = 'u32[]', space=smem, size = 0x4, offset = 0x48, fixed_abs, tag = 'smem constant byte address 0x48 - assertion arg 1']
  %s0 = inlined_call_operand.hbm [shape: s32[16], index: 0, kind: input, shape index: {}]
  %s1 = inlined_call_operand.hbm [shape: f32[8,128], index: 1, kind: input, shape index: {}]
  %s2 = inlined_call_operand.hbm [shape: f32[16,128], index: 2, kind: input, shape index: {}]
  %s3 = inlined_call_operand.hbm [shape: f32[2,8,128], index: 3, kind: output, shape index: {}]
  %s4 = sld [smem:[#allocation0]]
  $region59: #{tpu_custom_call.1} parent=0
    _
  %s6 = ssub.s32 1, %s4
  %s7 = scalar_select 0, %s6, %s4
  %9 = dma.hbm_to_smem %s0, 16, [#allocation5], [#allocation4]
  %10 = dma.done [#allocation4], 16
  %11 = sfence
  $region1: #{tpu_custom_call.1} parent=0
    #allocation6 [shape = 'u8[4096]{0}', space=vmem, size = 0x1000, scoped, tag = 'input window, operand 1, single buffered']
    #allocation7 [shape = 's32[2]{0}', space=sflag, size = 0x8, scoped, tag = 'scoped memory for tpu_custom_call.1']
    #allocation8 [shape = 's32[2]{0}', space=sflag, size = 0x8, scoped, tag = 'scoped memory for tpu_custom_call.1']
    #allocation9 [shape = 'u8[8192]{0}', space=vmem, size = 0x2000, scoped, tag = 'output window, operand 0']
    %12 = vsyncpa [#allocation7], 0
    %13 = vsyncpa [#allocation8], 0
    %s14 = scalar_lea.sflag [#allocation8], 1
    %15 = vsyncpa %s14, 0
    loop: start=0, step=1, limit=4
    $region2: #{tpu_custom_call.1} parent=1 // loop_pre_header
      _
    $region3: #{tpu_custom_call.1} parent=1 // loop_header
      %s17 = sphi 0, %s21
      %p18 = scmp.ge.s32.totalorder %s17, 4
      %s24 = sphi 0, %s36
      %s25 = sphi 0, %s32
      %s26 = sphi 0, %s24
      %s27 = sphi 0, %s25
      %s28 = sphi 0, %s26
      %s29 = sphi 0, %s27
      %s39 = sphi 0, %s41
      %s42 = sphi 0, %s39
      %s43 = sphi 0, %s42
      %s59 = sphi 0, %s43
      %s67 = sphi 0, %s69
      %s70 = sphi 0, %s67
      %s71 = sphi 0, %s70
      %s87 = sphi 0, %s71
    $region4: #{tpu_custom_call.1} parent=1 // loop_header_branch
      %20 = sbr.rel (%p18) target = $region8
    $region5: #{tpu_custom_call.1} parent=1 // loop_body
      %s22 = ssub.s32 %s17, 1
      %s23 = ssub.s32 %s17, 2
      %s30 = sadd.s32 1, %s25
      %p31 = scmp.ge.s32.totalorder %s30, 1
      %s32 = scalar_select %p31, 0, %s30
      %s33 = sadd.s32 1, %s24
      %s34 = scalar_select %p31, %s33, %s24
      %p35 = scmp.ge.s32.totalorder %s34, 2
      %s36 = scalar_select %p35, 0, %s34
      %s37 = ssub.s32 %s25, %s32
      %p38 = scmp.eq.s32.totalorder %s37, 0
      %s40 = sadd.s32 %s39, 1
      %s41 = scalar_select %p38, %s39, %s40
      %p44 = pneg %p38
      %p45 = scmp.eq.s32.totalorder %s17, 1
      %p46 = por %p44, %p45
      %p47 = scmp.ne.s32.totalorder %s39, %s42
      %p48 = scmp.eq.s32.totalorder %s17, 0
      %p49 = por %p47, %p48
      %p50 = scmp.ne.s32.totalorder %s39, %s42
      %p51 = scmp.eq.s32.totalorder %s22, 1
      %p52 = por %p50, %p51
      %p53 = scmp.ne.s32.totalorder %s42, %s43
      %p54 = scmp.eq.s32.totalorder %s22, 0
      %p55 = por %p53, %p54
      %p56 = scmp.ne.s32.totalorder %s42, %s43
      %p57 = scmp.eq.s32.totalorder %s23, 1
      %p58 = por %p56, %p57
      %p60 = scmp.ne.s32.totalorder %s43, %s59
      %p61 = scmp.eq.s32.totalorder %s23, 0
      %p62 = por %p60, %p61
      %s63 = ssub.s32 %s24, %s36
      %s64 = ssub.s32 %s25, %s32
      %s65 = sor.u32 %s63, %s64
      %p66 = scmp.eq.s32.totalorder %s65, 0
      %s68 = sadd.s32 %s67, 1
      %s69 = scalar_select %p66, %s67, %s68
      %p72 = pneg %p66
      %p73 = scmp.eq.s32.totalorder %s17, 1
      %p74 = por %p72, %p73
      %p75 = scmp.ne.s32.totalorder %s67, %s70
      %p76 = scmp.eq.s32.totalorder %s17, 0
      %p77 = por %p75, %p76
      %p78 = scmp.ne.s32.totalorder %s67, %s70
      %p79 = scmp.eq.s32.totalorder %s22, 1
      %p80 = por %p78, %p79
      %p81 = scmp.ne.s32.totalorder %s70, %s71
      %p82 = scmp.eq.s32.totalorder %s22, 0
      %p83 = por %p81, %p82
      %p84 = scmp.ne.s32.totalorder %s70, %s71
      %p85 = scmp.eq.s32.totalorder %s23, 1
      %p86 = por %p84, %p85
      %p88 = scmp.ne.s32.totalorder %s71, %s87
      %p89 = scmp.eq.s32.totalorder %s23, 0
      %p90 = por %p88, %p89
      %p91 = scmp.le.s32.totalorder 1, %s17
      %p92 = scmp.lt.s32.totalorder %s17, 3
      %p93 = pnand %p91, %p92
      %p94 = pneg %p93
      // Predicated region
      $region9: #{tpu_custom_call.1} parent=5 // pred_check
        _
      $region10: #{tpu_custom_call.1} parent=5 // pred_check_branch
        %96 = sbr.rel (%p93) target = $region12
      $region11: #{tpu_custom_call.1} parent=5 // pred_region
        %s97 = ssub.s32 %s17, 1
        // Predicated region
        $region13: #{tpu_custom_call.1} parent=11 // pred_check
          %p98 = pneg %p55
        $region14: #{tpu_custom_call.1} parent=11 // pred_check_branch
          %100 = sbr.rel (%p98) target = $region16
        $region15: #{tpu_custom_call.1} parent=11 // pred_region
          %s102 = ssub.s32 128, 128
          %103 = vsyncadd [#allocation7], %s102
          %s104 = smul.addr %s27, 128
          %s105 = scalar_lea.hbm %s1, %s104
          %s107 = sshll.u32 [#allocation6], 4
          %s108 = int_to_ptr.vmem [resolvable:$true] %s107
          %110 = dma.hbm_to_vmem [thread:$0]  %s105, 128, %s108, [#allocation7]
        $region16: #{tpu_custom_call.1} parent=11 // pred_fallthru
          _
      $region12: #{tpu_custom_call.1} parent=5 // pred_fallthru
        _
      %p111 = scmp.lt.s32.totalorder %s17, 2
      // Predicated region
      $region17: #{tpu_custom_call.1} parent=5 // pred_check
        %p112 = pneg %p111
      $region18: #{tpu_custom_call.1} parent=5 // pred_check_branch
        %114 = sbr.rel (%p112) target = $region20
      $region19: #{tpu_custom_call.1} parent=5 // pred_region
        _
      $region20: #{tpu_custom_call.1} parent=5 // pred_fallthru
        _
      %p115 = scmp.le.s32.totalorder 1, %s17
      %p116 = scmp.lt.s32.totalorder %s17, 3
      %p117 = pnand %p115, %p116
      %p118 = pneg %p117
      // Predicated region
      $region21: #{tpu_custom_call.1} parent=5 // pred_check
        _
      $region22: #{tpu_custom_call.1} parent=5 // pred_check_branch
        %120 = sbr.rel (%p117) target = $region24
      $region23: #{tpu_custom_call.1} parent=5 // pred_region
        %s121 = ssub.s32 %s17, 1
        // Predicated region
        $region25: #{tpu_custom_call.1} parent=23 // pred_check
          %p122 = pneg %p55
        $region26: #{tpu_custom_call.1} parent=23 // pred_check_branch
          %124 = sbr.rel (%p122) target = $region28
        $region27: #{tpu_custom_call.1} parent=23 // pred_region
          %125 = dma.done [#allocation7], 128
        $region28: #{tpu_custom_call.1} parent=23 // pred_fallthru
          _
        %p126 = pneg %p55
        %p127 = pneg %p52
        %p128 = pneg %p83
        %p129 = pneg %p80
        %s130 = sand.u32 %s70, 1
        %s131 = scalar_lea.sflag [#allocation8], %s130
        %s132 = sand.u32 %s70, 1
        %s133 = smul.addr %s132, 8
        %s134 = scalar_lea.vmem [#allocation9], %s133
        %s135 = smul.u32 %s26, 8
        %s136 = smul.u32 %s27, 8
        %s137 = sadd.s32 %s135, %s136
        loop: start=0, step=1, limit=8
        $region29: #{tpu_custom_call.1} parent=23 // loop_pre_header
          _
        $region30: #{tpu_custom_call.1} parent=23 // loop_header
          %s139 = sphi 0, %s143
          %p140 = scmp.ge.s32.totalorder %s139, 8
        $region31: #{tpu_custom_call.1} parent=23 // loop_header_branch
          %142 = sbr.rel (%p140) target = $region35
        $region32: #{tpu_custom_call.1} parent=23 // loop_body
          %s144 = sadd.s32 %s137, %s139
          %s145 = sld [smem:[#allocation5 + %s144]]
          %s146 = smul.addr %s145, 16
          %s147 = scalar_lea.hbm %s2, %s146
          %s148 = scalar_lea.vmem [#allocation2], %s139
          // Predicated region
          $region36: #{tpu_custom_call.1} parent=32 // pred_check
            _
          $region37: #{tpu_custom_call.1} parent=32 // pred_check_branch
            %150 = sbr.rel target = $region39
          $region38: #{tpu_custom_call.1} parent=32 // pred_region
            %151 = sst [smem:[#allocation12]] [#allocation11]
            %152 = sst [smem:[#allocation13]] [#allocation10]
          $region39: #{tpu_custom_call.1} parent=32 // pred_fallthru
            _
          %154 = shalt.err (0)
          %s156 = sshll.u32 %s148, 4
          %s157 = int_to_ptr.vmem [resolvable:$true] %s156
          %159 = dma.hbm_to_vmem [thread:$0]  %s147, 16, %s157, [#allocation3]
        $region33: #{tpu_custom_call.1} parent=23 // loop_footer
          %s143 = sadd.s32 1, %s139
        $region34: #{tpu_custom_call.1} parent=23 // loop_footer_branch
          %138 = sbr.rel target = $region30
        $region35: #{tpu_custom_call.1} parent=23 // loop_exit
          _
        loop: start=0, step=1, limit=8
        $region40: #{tpu_custom_call.1} parent=23 // loop_pre_header
          _
        $region41: #{tpu_custom_call.1} parent=23 // loop_header
          %s161 = sphi 0, %s165
          %p162 = scmp.ge.s32.totalorder %s161, 8
        $region42: #{tpu_custom_call.1} parent=23 // loop_header_branch
          %164 = sbr.rel (%p162) target = $region46
        $region43: #{tpu_custom_call.1} parent=23 // loop_body
          %167 = dma.done [#allocation3], 16
        $region44: #{tpu_custom_call.1} parent=23 // loop_footer
          %s165 = sadd.s32 1, %s161
        $region45: #{tpu_custom_call.1} parent=23 // loop_footer_branch
          %160 = sbr.rel target = $region41
        $region46: #{tpu_custom_call.1} parent=23 // loop_exit
          _
        %v168 = vld [vmem:[#allocation2] sm:$0xff]
        %v169 = vld [vmem:[#allocation6] sm:$0xff]
        %v170 = vadd.f32 %v168, %v169
        %171 = vst [vmem:[%s134] sm:$0xff] %v170
        %s172 = sand.u32 %s70, 1
        %s173 = scalar_lea.sflag [#allocation8], %s172
        %s174 = sand.u32 %s70, 1
        %s175 = smul.addr %s174, 8
        %s176 = scalar_lea.vmem [#allocation9], %s175
        // Predicated region
        $region47: #{tpu_custom_call.1} parent=23 // pred_check
          %p177 = pneg %p80
        $region48: #{tpu_custom_call.1} parent=23 // pred_check_branch
          %179 = sbr.rel (%p177) target = $region50
        $region49: #{tpu_custom_call.1} parent=23 // pred_region
          %s181 = ssub.s32 128, 128
          %182 = vsyncadd %s173, %s181
          %s183 = sadd.s32 %s27, %s26
          %s184 = smul.addr %s183, 128
          %s185 = scalar_lea.hbm %s3, %s184
          %s187 = sshll.u32 %s176, 4
          %s188 = int_to_ptr.vmem [resolvable:$true] %s187
          %190 = dma.vmem_to_hbm [thread:$0]  %s188, 128, %s185, %s173
        $region50: #{tpu_custom_call.1} parent=23 // pred_fallthru
          _
      $region24: #{tpu_custom_call.1} parent=5 // pred_fallthru
        _
      %p191 = scmp.le.s32.totalorder 2, %s17
      // Predicated region
      $region51: #{tpu_custom_call.1} parent=5 // pred_check
        %p192 = pneg %p191
      $region52: #{tpu_custom_call.1} parent=5 // pred_check_branch
        %194 = sbr.rel (%p192) target = $region54
      $region53: #{tpu_custom_call.1} parent=5 // pred_region
        %s195 = ssub.s32 %s17, 2
        // Predicated region
        $region55: #{tpu_custom_call.1} parent=53 // pred_check
          %p196 = pneg %p86
        $region56: #{tpu_custom_call.1} parent=53 // pred_check_branch
          %198 = sbr.rel (%p196) target = $region58
        $region57: #{tpu_custom_call.1} parent=53 // pred_region
          %s199 = sand.u32 %s71, 1
          %s200 = scalar_lea.sflag [#allocation8], %s199
          %s201 = sand.u32 %s71, 1
          %s202 = smul.addr %s201, 8
          %s203 = scalar_lea.vmem [#allocation9], %s202
          %204 = dma.done %s200, 128
        $region58: #{tpu_custom_call.1} parent=53 // pred_fallthru
          _
      $region54: #{tpu_custom_call.1} parent=5 // pred_fallthru
        _
    $region6: #{tpu_custom_call.1} parent=1 // loop_footer
      %s21 = sadd.s32 1, %s17
    $region7: #{tpu_custom_call.1} parent=1 // loop_footer_branch
      %16 = sbr.rel target = $region3
    $region8: #{tpu_custom_call.1} parent=1 // loop_exit
      _
    %205 = vsyncpa [#allocation7], 1
    %s206 = scalar_lea.sflag [#allocation7], 1
    %207 = vsyncpa %s206, 1
    %208 = vsyncpa [#allocation8], 1
    %s209 = scalar_lea.sflag [#allocation8], 1
    %210 = vsyncpa %s209, 1
  %211 = vsyncmov [#allocation3]
  %s212 = vpop.sfrf %211
  %p213 = scmp.eq.s32.totalorder %s212, 0
  %p214 = pneg %p213
  %216 = shalt.err (%p214)

</llo_original>
